<compile_context>
chip_gen: v6e
topology: v6e:2x2x1
jax: 0.10.0
libtpu: 0.0.40
codegen_flags: <defaults>
</compile_context>

<pallas_src>
import jax
import jax.numpy as jnp
from jax import lax
from jax.experimental import pallas as pl
from jax.experimental.pallas import tpu as pltpu


K_TOPK = 64          # Gate(k=64, patch_size=4, in_channels=128) as in MoEEncoder
PATCH = 4
GATE_CH = 128
NUM_GATES = 8
NUM_RESBLOCKS = 4


# --------------------------- Pallas: gating multiply ------------------------ #
def _gate_mul_kernel(x_ref, g_ref, o_ref):
    # x_ref: (c_tile, hw_tile)   activation tile (N,C,HW layout, batch squeezed)
    # g_ref: (1, hw_tile)        per-pixel gate row (broadcast over channels)
    # o_ref: (c_tile, hw_tile)
    o_ref[...] = x_ref[...] * g_ref[...]


def _pick_tiles(C, HW, itemsize):
    """Lane-dense, VMEM-friendly tiles.

    hw tile: largest multiple of 128 (<= 1024) that divides HW (fallback: HW).
    c  tile: largest multiple of 8 dividing C with the block under ~256 KiB
             (fallback: 8 or full C).  Keeps blocks far below v5e's 16 MiB
             scoped-VMEM default and gives the pipeline many grid steps.
    """
    hw_tile = HW
    t = 128
    while t <= min(HW, 1024):
        if HW % t == 0:
            hw_tile = t
        t += 128
    c_tile = C
    budget = 256 * 1024
    best = None
    t = 8
    while t <= C:
        if C % t == 0 and t * hw_tile * itemsize <= budget:
            best = t
        t += 8
    if best is not None:
        c_tile = best
    elif C % 8 == 0:
        c_tile = 8
    return c_tile, hw_tile


def gated_multiply_nchw(x, gate_pix):
    """out[b,c,h,w] = x[b,c,h,w] * gate_pix[b,0,h*W+w]   (Pallas, tiled)."""
    B, C, H, W = x.shape
    HW = H * W
    x3 = x.reshape(B, C, HW)            # free reshape: collapse trailing dims
    c_tile, hw_tile = _pick_tiles(C, HW, jnp.dtype(x.dtype).itemsize)
    grid = (B, C // c_tile, HW // hw_tile)
    out3 = pl.pallas_call(
        _gate_mul_kernel,
        out_shape=jax.ShapeDtypeStruct((B, C, HW), x.dtype),
        grid_spec=pltpu.PrefetchScalarGridSpec(
            num_scalar_prefetch=0,
            grid=grid,
            in_specs=[
                # batch dim squeezed (block dim None) -> kernel sees 2-D refs
                pl.BlockSpec((None, c_tile, hw_tile), lambda b, c, h: (b, c, h)),
                pl.BlockSpec((None, 1, hw_tile), lambda b, c, h: (b, 0, h)),
            ],
            out_specs=pl.BlockSpec((None, c_tile, hw_tile),
                                   lambda b, c, h: (b, c, h)),
        ),
        compiler_params=pltpu.CompilerParams(
            dimension_semantics=("parallel", "parallel", "parallel")),
    )(x3, gate_pix)
    return out3.reshape(B, C, H, W)


# ------------------------------- Gate (module) ------------------------------ #
def _fused_patch_scores(x, w1, w2, patch_size):
    """conv2d(x, w1, stride=p) -> conv2d(., w2, 1x1) fused into one strided conv
    (no nonlinearity between the two linear maps)."""
    C2 = w1.shape[0]
    w_comb = jnp.einsum('m,mcij->cij', w2.reshape(C2), w1)[None]   # (1, C, p, p)
    return lax.conv_general_dilated(
        x, w_comb, window_strides=(patch_size, patch_size), padding='VALID',
        dimension_numbers=('NCHW', 'OIHW', 'NCHW'),
        precision=lax.Precision.HIGHEST)


def _softmax_dim1(t):
    # F.softmax with no dim on a 4-D tensor -> implicit dim=1
    # (channel dim has size 1 here, so this yields all ones, as in PyTorch).
    return jax.nn.softmax(t, axis=1)


def gate_forward(x, w1, w2, *, k, patch_size, gating_activation=None):
    """Pallas-backed Gate.forward.  x: (B,C,H,W); w1: (C//2,C,p,p); w2: (1,C//2,1,1)."""
    B, C, H, W = x.shape
    p = patch_size
    nH, nW = H // p, W // p
    nP = nH * nW
    if k > nP:
        raise ValueError(f"Gate: k={k} exceeds number of patches nP={nP}")
    # --- pass A (tiny, XLA): fused score conv -> activation -> top-k ----------
    scores = _fused_patch_scores(x, w1, w2, p)                 # (B, 1, nH, nW)
    if gating_activation is not None:
        scores = gating_activation(scores)
    s_flat = scores.reshape(B, nP)
    vals, idxs = lax.top_k(s_flat, k)
    gate_p = jnp.zeros((B, nP), s_flat.dtype).at[
        jnp.arange(B)[:, None], idxs].add(vals)                # scatter-add
    # expand per-patch gate to a per-pixel row map (B,1,H*W); C-times smaller than x
    gate_pix = jnp.broadcast_to(
        gate_p.reshape(B, nH, 1, nW, 1), (B, nH, p, nW, p)).reshape(B, 1, H * W)
    # --- pass B (Pallas): tiled lane-dense gating multiply on NCHW data -------
    return gated_multiply_nchw(x, gate_pix.astype(x.dtype))


def gate_reference(x, w1, w2, *, k, patch_size, gating_activation=None):
    """Pure-JAX transcription of the PyTorch Gate.forward (two convs, top-k,
    scatter_add, repeat_interleave)."""
    B, C, H, W = x.shape
    p = patch_size
    dn = ('NCHW', 'OIHW', 'NCHW')
    g = lax.conv_general_dilated(x, w1, (p, p), 'VALID', dimension_numbers=dn,
                                 precision=lax.Precision.HIGHEST)
    s = lax.conv_general_dilated(g, w2, (1, 1), 'VALID', dimension_numbers=dn,
                                 precision=lax.Precision.HIGHEST)
    if gating_activation is not None:
        s = gating_activation(s)
    b, c, h, w = s.shape                                      # c == 1
    s_flat = s.reshape(b, c, h * w)
    vals, idxs = lax.top_k(s_flat, k)
    gate = jnp.zeros((b, c, h * w), s.dtype).at[
        jnp.arange(b)[:, None, None], jnp.arange(c)[None, :, None], idxs].add(vals)
    gate = gate.reshape(b, c, h, w)
    gate = jnp.repeat(gate, p, axis=2)
    gate = jnp.repeat(gate, p, axis=3)
    gate = jnp.repeat(gate, C, axis=1)
    return x * gate


# ---------------------- MoEEncoder building blocks (XLA) --------------------- #
def conv2d(x, w, b=None, stride=1, padding=0):
    out = lax.conv_general_dilated(
        x, w, window_strides=(stride, stride),
        padding=[(padding, padding), (padding, padding)],
        dimension_numbers=('NCHW', 'OIHW', 'NCHW'))
    if b is not None:
        out = out + b.reshape(1, -1, 1, 1)
    return out


def batch_norm_train(x, gamma, beta, eps=1e-5):
    mean = jnp.mean(x, axis=(0, 2, 3), keepdims=True)
    var = jnp.var(x, axis=(0, 2, 3), keepdims=True)
    xhat = (x - mean) * lax.rsqrt(var + eps)
    return xhat * gamma.reshape(1, -1, 1, 1) + beta.reshape(1, -1, 1, 1)


def group_norm(x, gamma, beta, num_groups, eps=1e-5):
    B, C, H, W = x.shape
    xg = x.reshape(B, num_groups, C // num_groups, H, W)
    mean = jnp.mean(xg, axis=(2, 3, 4), keepdims=True)
    var = jnp.var(xg, axis=(2, 3, 4), keepdims=True)
    xg = (xg - mean) * lax.rsqrt(var + eps)
    x = xg.reshape(B, C, H, W)
    return x * gamma.reshape(1, -1, 1, 1) + beta.reshape(1, -1, 1, 1)


def avg_pool_2x2(x):
    B, C, H, W = x.shape
    return x.reshape(B, C, H // 2, 2, W // 2, 2).mean(axis=(3, 5))


def residual_block(x, p):
    out = conv2d(x, p['w1'], p['b1'], stride=1, padding=1)
    out = batch_norm_train(out, p['bn1_g'], p['bn1_b'])
    out = jax.nn.relu(out)
    out = conv2d(out, p['w2'], p['b2'], stride=1, padding=1)
    out = batch_norm_train(out, p['bn2_g'], p['bn2_b'])
    out = out + x
    return jax.nn.relu(out)


def moe_encoder_forward(x, params):
    x = batch_norm_train(x, params['bn0_g'], params['bn0_b'])
    x = jax.nn.relu(x)
    x = conv2d(x, params['conv_w'], params['conv_b'], stride=1, padding=1)
    x = x + conv2d(x, params['pre_w'], params['pre_b'], stride=1, padding=0)
    branch_outs = []
    for g in params['gates']:
        y = gate_forward(x, g['gw1'], g['gw2'], k=K_TOPK, patch_size=PATCH,
                         gating_activation=_softmax_dim1)
        y = group_norm(y, g['gn1_g'], g['gn1_b'], num_groups=8)
        y = jax.nn.relu(y)
        y = conv2d(y, g['cw1'], g['cb1'], stride=1, padding=1)
        y = group_norm(y, g['gn2_g'], g['gn2_b'], num_groups=8)
        y = jax.nn.relu(y)
        y = conv2d(y, g['cw2'], g['cb2'], stride=1, padding=1)    # 128 -> 4 ch
        branch_outs.append(y)
    x = jnp.concatenate(branch_outs, axis=1)                      # (B, 32, H, W)
    for rb in params['resblocks']:
        x = residual_block(x, rb)
    x = conv2d(x, params['out_w'], params['out_b'], stride=2, padding=1)
    x = avg_pool_2x2(x)
    return x


# --------------------------------- init ------------------------------------- #
def _conv_init(key, out_c, in_c, kh, kw):
    fan_in = in_c * kh * kw
    std = (2.0 / fan_in) ** 0.5
    return std * jax.random.normal(key, (out_c, in_c, kh, kw), jnp.float32)


def init_moe_encoder_params(key):
    keys = iter(jax.random.split(key, 64))
    P = {
        'bn0_g': jnp.ones((3,), jnp.float32), 'bn0_b': jnp.zeros((3,), jnp.float32),
        'conv_w': _conv_init(next(keys), 128, 3, 3, 3),
        'conv_b': jnp.zeros((128,), jnp.float32),
        'pre_w': _conv_init(next(keys), 128, 128, 1, 1),
        'pre_b': jnp.zeros((128,), jnp.float32),
    }
    gates = []
    for _ in range(NUM_GATES):
        gates.append({
            'gw1': 1e-4 * jax.random.normal(next(keys), (GATE_CH // 2, GATE_CH, PATCH, PATCH), jnp.float32),
            'gw2': 1e-4 * jax.random.normal(next(keys), (1, GATE_CH // 2, 1, 1), jnp.float32),
            'gn1_g': jnp.ones((128,), jnp.float32), 'gn1_b': jnp.zeros((128,), jnp.float32),
            'cw1': _conv_init(next(keys), 128, 128, 3, 3), 'cb1': jnp.zeros((128,), jnp.float32),
            'gn2_g': jnp.ones((128,), jnp.float32), 'gn2_b': jnp.zeros((128,), jnp.float32),
            'cw2': _conv_init(next(keys), 4, 128, 3, 3), 'cb2': jnp.zeros((4,), jnp.float32),
        })
    P['gates'] = gates
    blocks = []
    for _ in range(NUM_RESBLOCKS):
        blocks.append({
            'w1': _conv_init(next(keys), 32, 32, 3, 3), 'b1': jnp.zeros((32,), jnp.float32),
            'bn1_g': jnp.ones((32,), jnp.float32), 'bn1_b': jnp.zeros((32,), jnp.float32),
            'w2': _conv_init(next(keys), 32, 32, 3, 3), 'b2': jnp.zeros((32,), jnp.float32),
            'bn2_g': jnp.ones((32,), jnp.float32), 'bn2_b': jnp.zeros((32,), jnp.float32),
        })
    P['resblocks'] = blocks
    P['out_w'] = _conv_init(next(keys), 32, 32, 3, 3)
    P['out_b'] = jnp.zeros((32,), jnp.float32)
    return P


# ---------------------------------- main ------------------------------------- #
if __name__ == "__main__":
    # Smallest shape consistent with the module: Gate(k=64, patch=4) needs
    # (H/4)*(W/4) >= 64 patches; 48x48 gives 144 patches (non-trivial top-k).
    B, H, W = 2, 48, 48
    root = jax.random.PRNGKey(0)
    k_x, k_p = jax.random.split(root)
    x_in = jax.random.normal(k_x, (B, 3, H, W), dtype=jnp.float32)
    params = init_moe_encoder_params(k_p)

    # Build the stem activation the gates actually see (for the Gate checks).
    t = batch_norm_train(x_in, params['bn0_g'], params['bn0_b'])
    t = jax.nn.relu(t)
    t = conv2d(t, params['conv_w'], params['conv_b'], stride=1, padding=1)
    t = t + conv2d(t, params['pre_w'], params['pre_b'], stride=1, padding=0)
    g0 = params['gates'][0]

    # (a) weight-fusion check: fused score conv == conv1 -> conv2 scores.
    dn = ('NCHW', 'OIHW', 'NCHW')
    s_fused = _fused_patch_scores(t, g0['gw1'], g0['gw2'], PATCH)
    s_ref = lax.conv_general_dilated(
        lax.conv_general_dilated(t, g0['gw1'], (PATCH, PATCH), 'VALID',
                                 dimension_numbers=dn,
                                 precision=lax.Precision.HIGHEST),
        g0['gw2'], (1, 1), 'VALID', dimension_numbers=dn,
        precision=lax.Precision.HIGHEST)
    assert jnp.allclose(s_fused, s_ref, rtol=1e-3, atol=1e-9), "score fusion mismatch"

    # (b) full Gate (Pallas gating multiply) vs pure-JAX reference.
    gate_out = jax.block_until_ready(
        gate_forward(t, g0['gw1'], g0['gw2'], k=K_TOPK, patch_size=PATCH,
                     gating_activation=_softmax_dim1))
    gate_ref = gate_reference(t, g0['gw1'], g0['gw2'], k=K_TOPK, patch_size=PATCH,
                              gating_activation=_softmax_dim1)
    assert jnp.allclose(gate_out, gate_ref, rtol=1e-5, atol=1e-6), "Gate mismatch"

    # Full MoEEncoder forward.
    fwd = jax.jit(moe_encoder_forward)
    out = jax.block_until_ready(fwd(x_in, params))
    assert out.shape == (B, 32, H // 4, W // 4), out.shape

    print("KERNEL_OK")
</pallas_src>

<mosaic_0001>
module attributes {stable_mosaic.version = 11 : i64} {
  func.func @_gate_mul_kernel(%arg0: i32, %arg1: i32, %arg2: i32, %arg3: memref<1x64x768xf32, #tpu.memory_space<vmem>>, %arg4: memref<1x1x768xf32, #tpu.memory_space<vmem>>, %arg5: memref<1x64x768xf32, #tpu.memory_space<vmem>>) attributes {dimension_semantics = [#tpu.dimension_semantics<parallel>, #tpu.dimension_semantics<parallel>, #tpu.dimension_semantics<parallel>], iteration_bounds = array<i64: 2, 2, 3>, scalar_prefetch = 0 : i64, scratch_operands = 0 : i64, tpu.core_type = #tpu.core_type<tc>, window_params = [{transform_indices = @transform_0, window_bounds = array<i64: 1, 64, 768>}, {transform_indices = @transform_1, window_bounds = array<i64: 1, 1, 768>}, {transform_indices = @transform_2, window_bounds = array<i64: 1, 64, 768>}]} {
    %c0 = arith.constant 0 : index
    %c0_0 = arith.constant 0 : index
    %c0_1 = arith.constant 0 : index
    %0 = vector.load %arg3[%c0, %c0_0, %c0_1] : memref<1x64x768xf32, #tpu.memory_space<vmem>>, vector<1x64x768xf32>
    %1 = vector.shape_cast %0 : vector<1x64x768xf32> to vector<64x768xf32>
    %c0_2 = arith.constant 0 : index
    %c0_3 = arith.constant 0 : index
    %c0_4 = arith.constant 0 : index
    %2 = vector.load %arg4[%c0_2, %c0_3, %c0_4] : memref<1x1x768xf32, #tpu.memory_space<vmem>>, vector<1x1x768xf32>
    %3 = vector.shape_cast %2 : vector<1x1x768xf32> to vector<1x768xf32>
    %4 = vector.broadcast %3 : vector<1x768xf32> to vector<64x768xf32>
    %5 = arith.mulf %1, %4 : vector<64x768xf32>
    %c0_5 = arith.constant 0 : index
    %c0_6 = arith.constant 0 : index
    %c0_7 = arith.constant 0 : index
    %6 = vector.load %arg5[%c0_5, %c0_6, %c0_7] : memref<1x64x768xf32, #tpu.memory_space<vmem>>, vector<1x64x768xf32>
    %7 = vector.shape_cast %6 : vector<1x64x768xf32> to vector<64x768xf32>
    %8 = vector.shape_cast %5 : vector<64x768xf32> to vector<1x64x768xf32>
    tpu.vector_store %arg5[%c0_5, %c0_6, %c0_7], %8 {strides = array<i32>} : memref<1x64x768xf32, #tpu.memory_space<vmem>>, vector<1x64x768xf32>,
    return
  }
  func.func @transform_0(%arg0: i32, %arg1: i32, %arg2: i32) -> (i32, i32, i32) {
    %c0_i32 = arith.constant 0 : i32
    return %arg0, %arg1, %arg2 : i32, i32, i32
  }
  func.func @transform_1(%arg0: i32, %arg1: i32, %arg2: i32) -> (i32, i32, i32) {
    %c0_i32 = arith.constant 0 : i32
    %c0_i32_0 = arith.constant 0 : i32
    return %arg0, %c0_i32, %arg2 : i32, i32, i32
  }
  func.func @transform_2(%arg0: i32, %arg1: i32, %arg2: i32) -> (i32, i32, i32) {
    %c0_i32 = arith.constant 0 : i32
    return %arg0, %arg1, %arg2 : i32, i32, i32
  }
}

</mosaic_0001>

<llo_original>
// kernel: tpu_custom_call.1
$region0: #{tpu_custom_call.1}
  #allocation0 [shape = 'u32[]', space=smem, size = 0x4, offset = 0x4, fixed_abs, tag = 'smem constant byte address 0x4 - core index']
  #allocation1 [shape = 'u32[144,128]{1,0:T(1,128)}', space=vmem, size = 0x12000, scoped, tag = 'internal scratch']
  %s0 = inlined_call_operand.hbm [shape: f32[2,128,2304], index: 0, kind: input, shape index: {}]
  %s1 = inlined_call_operand.hbm [shape: f32[2,1,2304], index: 1, kind: input, shape index: {}]
  %s2 = inlined_call_operand.hbm [shape: f32[2,128,2304], index: 2, kind: output, shape index: {}]
  %s3 = sld [smem:[#allocation0]]
  $region49: #{tpu_custom_call.1} parent=0
    _
  %s5 = ssub.s32 1, %s3
  %s6 = scalar_select 0, %s5, %s3
  $region1: #{tpu_custom_call.1} parent=0
    #allocation2 [shape = 'u8[393216]{0}', space=vmem, size = 0x60000, scoped, tag = 'input window, operand 0']
    #allocation3 [shape = 's32[2]{0}', space=sflag, size = 0x8, scoped, tag = 'scoped memory for tpu_custom_call.1']
    #allocation4 [shape = 's32[2]{0}', space=sflag, size = 0x8, scoped, tag = 'scoped memory for tpu_custom_call.1']
    #allocation5 [shape = 'u8[6144]{0}', space=vmem, size = 0x1800, scoped, tag = 'input window, operand 1']
    #allocation6 [shape = 's32[2]{0}', space=sflag, size = 0x8, scoped, tag = 'scoped memory for tpu_custom_call.1']
    #allocation7 [shape = 'u8[393216]{0}', space=vmem, size = 0x60000, scoped, tag = 'output window, operand 0']
    %7 = vsyncpa [#allocation3], 0
    %s8 = scalar_lea.sflag [#allocation3], 1
    %9 = vsyncpa %s8, 0
    %10 = vsyncpa [#allocation6], 0
    %s11 = scalar_lea.sflag [#allocation6], 1
    %12 = vsyncpa %s11, 0
    %13 = vsyncpa [#allocation4], 0
    %s14 = scalar_lea.sflag [#allocation4], 1
    %15 = vsyncpa %s14, 0
    loop: start=0, step=1, limit=14
    $region2: #{tpu_custom_call.1} parent=1 // loop_pre_header
      _
    $region3: #{tpu_custom_call.1} parent=1 // loop_header
      %s17 = sphi 0, %s21
      %p18 = scmp.ge.s32.totalorder %s17, 14
      %s24 = sphi 0, %s43
      %s25 = sphi 0, %s39
      %s26 = sphi 0, %s35
      %s27 = sphi 0, %s24
      %s28 = sphi 0, %s25
      %s29 = sphi 0, %s26
      %s30 = sphi 0, %s27
      %s31 = sphi 0, %s28
      %s32 = sphi 0, %s29
      %s50 = sphi 0, %s52
      %s53 = sphi 0, %s50
      %s54 = sphi 0, %s53
      %s70 = sphi 0, %s54
      %s78 = sphi 0, %s80
      %s81 = sphi 0, %s78
      %s82 = sphi 0, %s81
      %s98 = sphi 0, %s82
      %s108 = sphi 0, %s110
      %s111 = sphi 0, %s108
      %s112 = sphi 0, %s111
      %s128 = sphi 0, %s112
    $region4: #{tpu_custom_call.1} parent=1 // loop_header_branch
      %20 = sbr.rel (%p18) target = $region8
    $region5: #{tpu_custom_call.1} parent=1 // loop_body
      %s22 = ssub.s32 %s17, 1
      %s23 = ssub.s32 %s17, 2
      %s33 = sadd.s32 1, %s26
      %p34 = scmp.ge.s32.totalorder %s33, 3
      %s35 = scalar_select %p34, 0, %s33
      %s36 = sadd.s32 1, %s25
      %s37 = scalar_select %p34, %s36, %s25
      %p38 = scmp.ge.s32.totalorder %s37, 2
      %s39 = scalar_select %p38, 0, %s37
      %s40 = sadd.s32 1, %s24
      %s41 = scalar_select %p38, %s40, %s24
      %p42 = scmp.ge.s32.totalorder %s41, 2
      %s43 = scalar_select %p42, 0, %s41
      %s44 = ssub.s32 %s24, %s43
      %s45 = ssub.s32 %s25, %s39
      %s46 = sor.u32 %s44, %s45
      %s47 = ssub.s32 %s26, %s35
      %s48 = sor.u32 %s46, %s47
      %p49 = scmp.eq.s32.totalorder %s48, 0
      %s51 = sadd.s32 %s50, 1
      %s52 = scalar_select %p49, %s50, %s51
      %p55 = pneg %p49
      %p56 = scmp.eq.s32.totalorder %s17, 11
      %p57 = por %p55, %p56
      %p58 = scmp.ne.s32.totalorder %s50, %s53
      %p59 = scmp.eq.s32.totalorder %s17, 0
      %p60 = por %p58, %p59
      %p61 = scmp.ne.s32.totalorder %s50, %s53
      %p62 = scmp.eq.s32.totalorder %s22, 11
      %p63 = por %p61, %p62
      %p64 = scmp.ne.s32.totalorder %s53, %s54
      %p65 = scmp.eq.s32.totalorder %s22, 0
      %p66 = por %p64, %p65
      %p67 = scmp.ne.s32.totalorder %s53, %s54
      %p68 = scmp.eq.s32.totalorder %s23, 11
      %p69 = por %p67, %p68
      %p71 = scmp.ne.s32.totalorder %s54, %s70
      %p72 = scmp.eq.s32.totalorder %s23, 0
      %p73 = por %p71, %p72
      %s74 = ssub.s32 %s24, %s43
      %s75 = ssub.s32 %s26, %s35
      %s76 = sor.u32 %s74, %s75
      %p77 = scmp.eq.s32.totalorder %s76, 0
      %s79 = sadd.s32 %s78, 1
      %s80 = scalar_select %p77, %s78, %s79
      %p83 = pneg %p77
      %p84 = scmp.eq.s32.totalorder %s17, 11
      %p85 = por %p83, %p84
      %p86 = scmp.ne.s32.totalorder %s78, %s81
      %p87 = scmp.eq.s32.totalorder %s17, 0
      %p88 = por %p86, %p87
      %p89 = scmp.ne.s32.totalorder %s78, %s81
      %p90 = scmp.eq.s32.totalorder %s22, 11
      %p91 = por %p89, %p90
      %p92 = scmp.ne.s32.totalorder %s81, %s82
      %p93 = scmp.eq.s32.totalorder %s22, 0
      %p94 = por %p92, %p93
      %p95 = scmp.ne.s32.totalorder %s81, %s82
      %p96 = scmp.eq.s32.totalorder %s23, 11
      %p97 = por %p95, %p96
      %p99 = scmp.ne.s32.totalorder %s82, %s98
      %p100 = scmp.eq.s32.totalorder %s23, 0
      %p101 = por %p99, %p100
      %s102 = ssub.s32 %s24, %s43
      %s103 = ssub.s32 %s25, %s39
      %s104 = sor.u32 %s102, %s103
      %s105 = ssub.s32 %s26, %s35
      %s106 = sor.u32 %s104, %s105
      %p107 = scmp.eq.s32.totalorder %s106, 0
      %s109 = sadd.s32 %s108, 1
      %s110 = scalar_select %p107, %s108, %s109
      %p113 = pneg %p107
      %p114 = scmp.eq.s32.totalorder %s17, 11
      %p115 = por %p113, %p114
      %p116 = scmp.ne.s32.totalorder %s108, %s111
      %p117 = scmp.eq.s32.totalorder %s17, 0
      %p118 = por %p116, %p117
      %p119 = scmp.ne.s32.totalorder %s108, %s111
      %p120 = scmp.eq.s32.totalorder %s22, 11
      %p121 = por %p119, %p120
      %p122 = scmp.ne.s32.totalorder %s111, %s112
      %p123 = scmp.eq.s32.totalorder %s22, 0
      %p124 = por %p122, %p123
      %p125 = scmp.ne.s32.totalorder %s111, %s112
      %p126 = scmp.eq.s32.totalorder %s23, 11
      %p127 = por %p125, %p126
      %p129 = scmp.ne.s32.totalorder %s112, %s128
      %p130 = scmp.eq.s32.totalorder %s23, 0
      %p131 = por %p129, %p130
      %p132 = scmp.le.s32.totalorder 1, %s17
      %p133 = scmp.lt.s32.totalorder %s17, 13
      %p134 = pnand %p132, %p133
      %p135 = pneg %p134
      // Predicated region
      $region9: #{tpu_custom_call.1} parent=5 // pred_check
        _
      $region10: #{tpu_custom_call.1} parent=5 // pred_check_branch
        %137 = sbr.rel (%p134) target = $region12
      $region11: #{tpu_custom_call.1} parent=5 // pred_region
        %s138 = ssub.s32 %s17, 1
      $region12: #{tpu_custom_call.1} parent=5 // pred_fallthru
        _
      %p139 = scmp.lt.s32.totalorder %s17, 12
      // Predicated region
      $region13: #{tpu_custom_call.1} parent=5 // pred_check
        %p140 = pneg %p139
      $region14: #{tpu_custom_call.1} parent=5 // pred_check_branch
        %142 = sbr.rel (%p140) target = $region16
      $region15: #{tpu_custom_call.1} parent=5 // pred_region
        // Predicated region
        $region17: #{tpu_custom_call.1} parent=15 // pred_check
          %p143 = pneg %p60
        $region18: #{tpu_custom_call.1} parent=15 // pred_check_branch
          %145 = sbr.rel (%p143) target = $region20
        $region19: #{tpu_custom_call.1} parent=15 // pred_region
          %s146 = sand.u32 %s50, 1
          %s147 = scalar_lea.sflag [#allocation3], %s146
          %s148 = sand.u32 %s50, 1
          %s149 = smul.addr %s148, 384
          %s150 = scalar_lea.vmem [#allocation2], %s149
          %s151 = smul.u32 8, %s25
          %s152 = smul.u32 6, %s26
          %s154 = ssub.s32 6144, 6144
          %155 = vsyncadd %s147, %s154
          %s156 = smul.addr %s151, 18
          %s157 = sadd.s32 %s152, %s156
          %s158 = smul.addr %s24, 288
          %s159 = sadd.s32 %s157, %s158
          %s160 = smul.addr %s159, 128
          %s161 = scalar_lea.hbm %s0, %s160
          %s162 = sshll.u32 %s150, 4
          %s163 = int_to_ptr.vmem [resolvable:$true] %s162
          %168 = dma.hbm_to_vmem [thread:$0]  %s161, 6144, %s163, %s147, 2304, 768, 48
        $region20: #{tpu_custom_call.1} parent=15 // pred_fallthru
          _
        // Predicated region
        $region21: #{tpu_custom_call.1} parent=15 // pred_check
          %p169 = pneg %p88
        $region22: #{tpu_custom_call.1} parent=15 // pred_check_branch
          %171 = sbr.rel (%p169) target = $region24
        $region23: #{tpu_custom_call.1} parent=15 // pred_region
          %s172 = sand.u32 %s78, 1
          %s173 = scalar_lea.sflag [#allocation6], %s172
          %s174 = sand.u32 %s78, 1
          %s175 = smul.addr %s174, 6
          %s176 = scalar_lea.vmem [#allocation5], %s175
          %s177 = smul.u32 6, %s26
          %s179 = ssub.s32 96, 96
          %180 = vsyncadd %s173, %s179
          %s181 = smul.addr %s24, 18
          %s182 = sadd.s32 %s177, %s181
          %s183 = smul.addr %s182, 16
          %s184 = scalar_lea.hbm %s1, %s183
          %s186 = sshll.u32 %s176, 4
          %s187 = int_to_ptr.vmem [resolvable:$true] %s186
          %189 = dma.hbm_to_vmem [thread:$0]  %s184, 96, %s187, %s173
        $region24: #{tpu_custom_call.1} parent=15 // pred_fallthru
          _
      $region16: #{tpu_custom_call.1} parent=5 // pred_fallthru
        _
      %p190 = scmp.le.s32.totalorder 1, %s17
      %p191 = scmp.lt.s32.totalorder %s17, 13
      %p192 = pnand %p190, %p191
      %p193 = pneg %p192
      // Predicated region
      $region25: #{tpu_custom_call.1} parent=5 // pred_check
        _
      $region26: #{tpu_custom_call.1} parent=5 // pred_check_branch
        %195 = sbr.rel (%p192) target = $region28
      $region27: #{tpu_custom_call.1} parent=5 // pred_region
        %s196 = ssub.s32 %s17, 1
        %s197 = sand.u32 %s53, 1
        %s198 = scalar_lea.sflag [#allocation3], %s197
        %s199 = sand.u32 %s53, 1
        %s200 = smul.addr %s199, 384
        %s201 = scalar_lea.vmem [#allocation2], %s200
        // Predicated region
        $region29: #{tpu_custom_call.1} parent=27 // pred_check
          %p202 = pneg %p66
        $region30: #{tpu_custom_call.1} parent=27 // pred_check_branch
          %204 = sbr.rel (%p202) target = $region32
        $region31: #{tpu_custom_call.1} parent=27 // pred_region
          %205 = dma.done %s198, 6144
        $region32: #{tpu_custom_call.1} parent=27 // pred_fallthru
          _
        %s206 = sand.u32 %s81, 1
        %s207 = scalar_lea.sflag [#allocation6], %s206
        %s208 = sand.u32 %s81, 1
        %s209 = smul.addr %s208, 6
        %s210 = scalar_lea.vmem [#allocation5], %s209
        // Predicated region
        $region33: #{tpu_custom_call.1} parent=27 // pred_check
          %p211 = pneg %p94
        $region34: #{tpu_custom_call.1} parent=27 // pred_check_branch
          %213 = sbr.rel (%p211) target = $region36
        $region35: #{tpu_custom_call.1} parent=27 // pred_region
          %214 = dma.done %s207, 96
        $region36: #{tpu_custom_call.1} parent=27 // pred_fallthru
          _
        %s215 = sand.u32 %s53, 1
        %s216 = scalar_lea.sflag [#allocation3], %s215
        %s217 = sand.u32 %s53, 1
        %s218 = smul.addr %s217, 384
        %s219 = scalar_lea.vmem [#allocation2], %s218
        %p220 = pneg %p66
        %p221 = pneg %p63
        %s222 = sand.u32 %s81, 1
        %s223 = scalar_lea.sflag [#allocation6], %s222
        %s224 = sand.u32 %s81, 1
        %s225 = smul.addr %s224, 6
        %s226 = scalar_lea.vmem [#allocation5], %s225
        %p227 = pneg %p94
        %p228 = pneg %p91
        %p229 = pneg %p124
        %p230 = pneg %p121
        %s231 = sand.u32 %s111, 1
        %s232 = scalar_lea.sflag [#allocation4], %s231
        %s233 = sand.u32 %s111, 1
        %s234 = smul.addr %s233, 384
        %s235 = scalar_lea.vmem [#allocation7], %s234
        %s236 = smul.u32 8, %s28
        %s237 = smul.u32 6, %s29
        %s238 = smul.u32 6, %s29
        %s239 = smul.u32 8, %s28
        %s240 = smul.u32 6, %s29
        %v241 = vld [vmem:[%s201] sm:$0xff]
        %v242 = vld [vmem:[%s201 + $0x8] sm:$0xff]
        %v243 = vld [vmem:[%s201 + $0x10] sm:$0xff]
        %v244 = vld [vmem:[%s201 + $0x18] sm:$0xff]
        %v245 = vld [vmem:[%s201 + $0x20] sm:$0xff]
        %v246 = vld [vmem:[%s201 + $0x28] sm:$0xff]
        %v247 = vld [vmem:[%s201 + $0x30] sm:$0xff]
        %v248 = vld [vmem:[%s201 + $0x38] sm:$0xff]
        %v249 = vld [vmem:[%s201 + $0x40] sm:$0xff]
        %v250 = vld [vmem:[%s201 + $0x48] sm:$0xff]
        %v251 = vld [vmem:[%s201 + $0x50] sm:$0xff]
        %v252 = vld [vmem:[%s201 + $0x58] sm:$0xff]
        %v253 = vld [vmem:[%s201 + $0x60] sm:$0xff]
        %v254 = vld [vmem:[%s201 + $0x68] sm:$0xff]
        %v255 = vld [vmem:[%s201 + $0x70] sm:$0xff]
        %v256 = vld [vmem:[%s201 + $0x78] sm:$0xff]
        %v257 = vld [vmem:[%s201 + $0x80] sm:$0xff]
        %v258 = vld [vmem:[%s201 + $0x88] sm:$0xff]
        %v259 = vld [vmem:[%s201 + $0x90] sm:$0xff]
        %v260 = vld [vmem:[%s201 + $0x98] sm:$0xff]
        %v261 = vld [vmem:[%s201 + $0xa0] sm:$0xff]
        %v262 = vld [vmem:[%s201 + $0xa8] sm:$0xff]
        %v263 = vld [vmem:[%s201 + $0xb0] sm:$0xff]
        %v264 = vld [vmem:[%s201 + $0xb8] sm:$0xff]
        %v265 = vld [vmem:[%s201 + $0xc0] sm:$0xff]
        %v266 = vld [vmem:[%s201 + $0xc8] sm:$0xff]
        %v267 = vld [vmem:[%s201 + $0xd0] sm:$0xff]
        %v268 = vld [vmem:[%s201 + $0xd8] sm:$0xff]
        %v269 = vld [vmem:[%s201 + $0xe0] sm:$0xff]
        %v270 = vld [vmem:[%s201 + $0xe8] sm:$0xff]
        %v271 = vld [vmem:[%s201 + $0xf0] sm:$0xff]
        %v272 = vld [vmem:[%s201 + $0xf8] sm:$0xff]
        %v273 = vld [vmem:[%s201 + $0x100] sm:$0xff]
        %v274 = vld [vmem:[%s201 + $0x108] sm:$0xff]
        %v275 = vld [vmem:[%s201 + $0x110] sm:$0xff]
        %v276 = vld [vmem:[%s201 + $0x118] sm:$0xff]
        %v277 = vld [vmem:[%s201 + $0x120] sm:$0xff]
        %v278 = vld [vmem:[%s201 + $0x128] sm:$0xff]
        %v279 = vld [vmem:[%s201 + $0x130] sm:$0xff]
        %v280 = vld [vmem:[%s201 + $0x138] sm:$0xff]
        %v281 = vld [vmem:[%s201 + $0x140] sm:$0xff]
        %v282 = vld [vmem:[%s201 + $0x148] sm:$0xff]
        %v283 = vld [vmem:[%s201 + $0x150] sm:$0xff]
        %v284 = vld [vmem:[%s201 + $0x158] sm:$0xff]
        %v285 = vld [vmem:[%s201 + $0x160] sm:$0xff]
        %v286 = vld [vmem:[%s201 + $0x168] sm:$0xff]
        %v287 = vld [vmem:[%s201 + $0x170] sm:$0xff]
        %v288 = vld [vmem:[%s201 + $0x178] sm:$0xff]
        %v289 = vld [vmem:[%s210] sm:$0x3f]
        %v291 = vlaneseq
        %v292 = vshrl.u32 %v291, 7
        %v293 = vsub.s32 0, %v292
        %v294 = vrot.slane %v289, %v293
        %v295 = vlaneseq
        %v296 = vshrl.u32 %v295, 7
        %v297 = vsub.s32 1, %v296
        %v298 = vrot.slane %v289, %v297
        %v299 = vlaneseq
        %v300 = vshrl.u32 %v299, 7
        %v301 = vsub.s32 2, %v300
        %v302 = vrot.slane %v289, %v301
        %v303 = vlaneseq
        %v304 = vshrl.u32 %v303, 7
        %v305 = vsub.s32 3, %v304
        %v306 = vrot.slane %v289, %v305
        %v307 = vlaneseq
        %v308 = vshrl.u32 %v307, 7
        %v309 = vsub.s32 4, %v308
        %v310 = vrot.slane %v289, %v309
        %v311 = vlaneseq
        %v312 = vshrl.u32 %v311, 7
        %v313 = vsub.s32 5, %v312
        %v314 = vrot.slane %v289, %v313
        %v321 = vmul.f32 %v241, %v294
        %v322 = vmul.f32 %v242, %v298
        %v323 = vmul.f32 %v243, %v302
        %v324 = vmul.f32 %v244, %v306
        %v325 = vmul.f32 %v245, %v310
        %v326 = vmul.f32 %v246, %v314
        %v327 = vmul.f32 %v247, %v294
        %v328 = vmul.f32 %v248, %v298
        %v329 = vmul.f32 %v249, %v302
        %v330 = vmul.f32 %v250, %v306
        %v331 = vmul.f32 %v251, %v310
        %v332 = vmul.f32 %v252, %v314
        %v333 = vmul.f32 %v253, %v294
        %v334 = vmul.f32 %v254, %v298
        %v335 = vmul.f32 %v255, %v302
        %v336 = vmul.f32 %v256, %v306
        %v337 = vmul.f32 %v257, %v310
        %v338 = vmul.f32 %v258, %v314
        %v339 = vmul.f32 %v259, %v294
        %v340 = vmul.f32 %v260, %v298
        %v341 = vmul.f32 %v261, %v302
        %v342 = vmul.f32 %v262, %v306
        %v343 = vmul.f32 %v263, %v310
        %v344 = vmul.f32 %v264, %v314
        %v345 = vmul.f32 %v265, %v294
        %v346 = vmul.f32 %v266, %v298
        %v347 = vmul.f32 %v267, %v302
        %v348 = vmul.f32 %v268, %v306
        %v349 = vmul.f32 %v269, %v310
        %v350 = vmul.f32 %v270, %v314
        %v351 = vmul.f32 %v271, %v294
        %v352 = vmul.f32 %v272, %v298
        %v353 = vmul.f32 %v273, %v302
        %v354 = vmul.f32 %v274, %v306
        %v355 = vmul.f32 %v275, %v310
        %v356 = vmul.f32 %v276, %v314
        %v357 = vmul.f32 %v277, %v294
        %v358 = vmul.f32 %v278, %v298
        %v359 = vmul.f32 %v279, %v302
        %v360 = vmul.f32 %v280, %v306
        %v361 = vmul.f32 %v281, %v310
        %v362 = vmul.f32 %v282, %v314
        %v363 = vmul.f32 %v283, %v294
        %v364 = vmul.f32 %v284, %v298
        %v365 = vmul.f32 %v285, %v302
        %v366 = vmul.f32 %v286, %v306
        %v367 = vmul.f32 %v287, %v310
        %v368 = vmul.f32 %v288, %v314
        %369 = vst [vmem:[%s235] sm:$0xff] %v321
        %370 = vst [vmem:[%s235 + $0x8] sm:$0xff] %v322
        %371 = vst [vmem:[%s235 + $0x10] sm:$0xff] %v323
        %372 = vst [vmem:[%s235 + $0x18] sm:$0xff] %v324
        %373 = vst [vmem:[%s235 + $0x20] sm:$0xff] %v325
        %374 = vst [vmem:[%s235 + $0x28] sm:$0xff] %v326
        %375 = vst [vmem:[%s235 + $0x30] sm:$0xff] %v327
        %376 = vst [vmem:[%s235 + $0x38] sm:$0xff] %v328
        %377 = vst [vmem:[%s235 + $0x40] sm:$0xff] %v329
        %378 = vst [vmem:[%s235 + $0x48] sm:$0xff] %v330
        %379 = vst [vmem:[%s235 + $0x50] sm:$0xff] %v331
        %380 = vst [vmem:[%s235 + $0x58] sm:$0xff] %v332
        %381 = vst [vmem:[%s235 + $0x60] sm:$0xff] %v333
        %382 = vst [vmem:[%s235 + $0x68] sm:$0xff] %v334
        %383 = vst [vmem:[%s235 + $0x70] sm:$0xff] %v335
        %384 = vst [vmem:[%s235 + $0x78] sm:$0xff] %v336
        %385 = vst [vmem:[%s235 + $0x80] sm:$0xff] %v337
        %386 = vst [vmem:[%s235 + $0x88] sm:$0xff] %v338
        %387 = vst [vmem:[%s235 + $0x90] sm:$0xff] %v339
        %388 = vst [vmem:[%s235 + $0x98] sm:$0xff] %v340
        %389 = vst [vmem:[%s235 + $0xa0] sm:$0xff] %v341
        %390 = vst [vmem:[%s235 + $0xa8] sm:$0xff] %v342
        %391 = vst [vmem:[%s235 + $0xb0] sm:$0xff] %v343
        %392 = vst [vmem:[%s235 + $0xb8] sm:$0xff] %v344
        %393 = vst [vmem:[%s235 + $0xc0] sm:$0xff] %v345
        %394 = vst [vmem:[%s235 + $0xc8] sm:$0xff] %v346
        %395 = vst [vmem:[%s235 + $0xd0] sm:$0xff] %v347
        %396 = vst [vmem:[%s235 + $0xd8] sm:$0xff] %v348
        %397 = vst [vmem:[%s235 + $0xe0] sm:$0xff] %v349
        %398 = vst [vmem:[%s235 + $0xe8] sm:$0xff] %v350
        %399 = vst [vmem:[%s235 + $0xf0] sm:$0xff] %v351
        %400 = vst [vmem:[%s235 + $0xf8] sm:$0xff] %v352
        %401 = vst [vmem:[%s235 + $0x100] sm:$0xff] %v353
        %402 = vst [vmem:[%s235 + $0x108] sm:$0xff] %v354
        %403 = vst [vmem:[%s235 + $0x110] sm:$0xff] %v355
        %404 = vst [vmem:[%s235 + $0x118] sm:$0xff] %v356
        %405 = vst [vmem:[%s235 + $0x120] sm:$0xff] %v357
        %406 = vst [vmem:[%s235 + $0x128] sm:$0xff] %v358
        %407 = vst [vmem:[%s235 + $0x130] sm:$0xff] %v359
        %408 = vst [vmem:[%s235 + $0x138] sm:$0xff] %v360
        %409 = vst [vmem:[%s235 + $0x140] sm:$0xff] %v361
        %410 = vst [vmem:[%s235 + $0x148] sm:$0xff] %v362
        %411 = vst [vmem:[%s235 + $0x150] sm:$0xff] %v363
        %412 = vst [vmem:[%s235 + $0x158] sm:$0xff] %v364
        %413 = vst [vmem:[%s235 + $0x160] sm:$0xff] %v365
        %414 = vst [vmem:[%s235 + $0x168] sm:$0xff] %v366
        %415 = vst [vmem:[%s235 + $0x170] sm:$0xff] %v367
        %416 = vst [vmem:[%s235 + $0x178] sm:$0xff] %v368
        %s417 = sand.u32 %s111, 1
        %s418 = scalar_lea.sflag [#allocation4], %s417
        %s419 = sand.u32 %s111, 1
        %s420 = smul.addr %s419, 384
        %s421 = scalar_lea.vmem [#allocation7], %s420
        // Predicated region
        $region37: #{tpu_custom_call.1} parent=27 // pred_check
          %p422 = pneg %p121
        $region38: #{tpu_custom_call.1} parent=27 // pred_check_branch
          %424 = sbr.rel (%p422) target = $region40
        $region39: #{tpu_custom_call.1} parent=27 // pred_region
          %s425 = smul.u32 8, %s28
          %s426 = smul.u32 6, %s29
          %s428 = ssub.s32 6144, 6144
          %429 = vsyncadd %s418, %s428
          %s430 = smul.addr %s425, 18
          %s431 = sadd.s32 %s426, %s430
          %s432 = smul.addr %s27, 288
          %s433 = sadd.s32 %s431, %s432
          %s434 = smul.addr %s433, 128
          %s435 = scalar_lea.hbm %s2, %s434
          %s436 = sshll.u32 %s421, 4
          %s437 = int_to_ptr.vmem [resolvable:$true] %s436
          %442 = dma.vmem_to_hbm [thread:$0]  %s437, 6144, %s435, %s418, 768, 2304, 48
        $region40: #{tpu_custom_call.1} parent=27 // pred_fallthru
          _
      $region28: #{tpu_custom_call.1} parent=5 // pred_fallthru
        _
      %p443 = scmp.le.s32.totalorder 2, %s17
      // Predicated region
      $region41: #{tpu_custom_call.1} parent=5 // pred_check
        %p444 = pneg %p443
      $region42: #{tpu_custom_call.1} parent=5 // pred_check_branch
        %446 = sbr.rel (%p444) target = $region44
      $region43: #{tpu_custom_call.1} parent=5 // pred_region
        %s447 = ssub.s32 %s17, 2
        // Predicated region
        $region45: #{tpu_custom_call.1} parent=43 // pred_check
          %p448 = pneg %p127
        $region46: #{tpu_custom_call.1} parent=43 // pred_check_branch
          %450 = sbr.rel (%p448) target = $region48
        $region47: #{tpu_custom_call.1} parent=43 // pred_region
          %s451 = sand.u32 %s112, 1
          %s452 = scalar_lea.sflag [#allocation4], %s451
          %s453 = sand.u32 %s112, 1
          %s454 = smul.addr %s453, 384
          %s455 = scalar_lea.vmem [#allocation7], %s454
          %456 = dma.done %s452, 6144
        $region48: #{tpu_custom_call.1} parent=43 // pred_fallthru
          _
      $region44: #{tpu_custom_call.1} parent=5 // pred_fallthru
        _
    $region6: #{tpu_custom_call.1} parent=1 // loop_footer
      %s21 = sadd.s32 1, %s17
    $region7: #{tpu_custom_call.1} parent=1 // loop_footer_branch
      %16 = sbr.rel target = $region3
    $region8: #{tpu_custom_call.1} parent=1 // loop_exit
      _
    %457 = vsyncpa [#allocation3], 1
    %s458 = scalar_lea.sflag [#allocation3], 1
    %459 = vsyncpa %s458, 1
    %460 = vsyncpa [#allocation6], 1
    %s461 = scalar_lea.sflag [#allocation6], 1
    %462 = vsyncpa %s461, 1
    %463 = vsyncpa [#allocation4], 1
    %s464 = scalar_lea.sflag [#allocation4], 1
    %465 = vsyncpa %s464, 1

</llo_original>
